<compile_context>
chip_gen: v7x
topology: tpu7x:2x2x1
jax: 0.10.0
libtpu: 0.0.40
codegen_flags: <defaults>
</compile_context>

<pallas_src>
import functools

import jax
import jax.numpy as jnp
from jax.experimental import pallas as pl
from jax.experimental.pallas import tpu as pltpu

VOCAB = 128       # gloss_vocab_size
EMBED = 128
HID1 = 256
HID2 = 512
POSE_DIM = 51
OUT_PAD = 128     # lane-dense output width (POSE_DIM padded to 128)
BN_EPS = 1e-5


def _boundary_masks(tile_n, seq_len):
    """(tile_n, 1) f32 masks: 1.0 where a previous / next row exists in-sequence.

    Tiles are aligned to sequence starts (tile_n % seq_len == 0), so the local
    row index modulo seq_len equals the global one.
    """
    r = jax.lax.broadcasted_iota(jnp.int32, (tile_n, 1), 0)
    not_first = (r % seq_len != 0).astype(jnp.float32)
    not_last = (r % seq_len != seq_len - 1).astype(jnp.float32)
    return not_first, not_last


def _taps_bf16(h, not_first, not_last, tile_n):
    """Conv taps (h[t-1], h[t], h[t+1]) as bf16, zeroed at sequence edges.

    `h` is f32; the roll runs in f32 (XLU, overlaps MXU) and each tap is cast
    to bf16 right after masking so downstream concat/matmul traffic is
    half-width.
    """
    h_prev = (pltpu.roll(h, shift=1, axis=0) * not_first).astype(jnp.bfloat16)
    h_next = (pltpu.roll(h, shift=tile_n - 1, axis=0) * not_last).astype(jnp.bfloat16)
    return h_prev, h.astype(jnp.bfloat16), h_next


def _pass1_kernel(idx_ref, tab_ref, w1_ref, b1_ref, h1_ref, stats_ref, *, seq_len):
    """Embedding + Conv1d(128->256) + ReLU, plus per-tile BN partial sums."""
    tile_n = idx_ref.shape[0]

    # Embedding as one-hot @ table (single MXU matmul).
    idx = idx_ref[...]                                             # (tile_n, 1) i32
    onehot = (jax.lax.broadcasted_iota(jnp.int32, (tile_n, VOCAB), 1) == idx
              ).astype(jnp.bfloat16)                               # (tile_n, V)
    x = jnp.dot(onehot, tab_ref[...],
                preferred_element_type=jnp.float32)                # (tile_n, 128) f32

    not_first, not_last = _boundary_masks(tile_n, seq_len)

    # Conv1d(128->256, k=3, p=1): pack the 3 bf16 taps -> one K=384 matmul.
    xp, xc, xn = _taps_bf16(x, not_first, not_last, tile_n)
    xin = jnp.concatenate([xp, xc, xn], axis=1)                    # (tile_n, 384) bf16
    h1 = jnp.dot(xin, w1_ref[...], preferred_element_type=jnp.float32) + b1_ref[...]
    h1 = jnp.maximum(h1, 0.0)                                      # f32

    # bf16 HBM round trip for the inter-pass activation (dominant traffic term).
    h1_ref[...] = h1.astype(jnp.bfloat16)

    # Per-tile BatchNorm partial sums (f32): rows 0-3 = sum, rows 4-7 = sum sq.
    csum = jnp.sum(h1, axis=0, keepdims=True)                      # (1, 256)
    csq = jnp.sum(h1 * h1, axis=0, keepdims=True)                  # (1, 256)
    stats_ref[0] = jnp.concatenate(
        [jnp.broadcast_to(csum, (4, HID1)), jnp.broadcast_to(csq, (4, HID1))],
        axis=0)


def _pass2_kernel(h1_ref, scale_ref, shift_ref, w2_ref, b2_ref, w3_ref, b3_ref,
                  out_ref, *, seq_len):
    """Folded BatchNorm + Conv1d(256->512) + ReLU + Conv1d(512->51, padded)."""
    tile_n = h1_ref.shape[0]
    not_first, not_last = _boundary_masks(tile_n, seq_len)

    # BatchNorm folded into one scale/shift (f32 math on the bf16 activation).
    h1 = h1_ref[...].astype(jnp.float32) * scale_ref[...] + shift_ref[...]

    # Conv1d(256->512) + ReLU: three per-tap accumulating matmuls (no concat slab).
    hp, hc, hn = _taps_bf16(h1, not_first, not_last, tile_n)
    h2 = (jnp.dot(hp, w2_ref[0], preferred_element_type=jnp.float32)
          + jnp.dot(hc, w2_ref[1], preferred_element_type=jnp.float32)
          + jnp.dot(hn, w2_ref[2], preferred_element_type=jnp.float32)
          + b2_ref[...])
    h2 = jnp.maximum(h2, 0.0)                                      # (tile_n, 512) f32

    # Conv1d(512->51), lane-dense (output channels zero-padded to 128).
    hp, hc, hn = _taps_bf16(h2, not_first, not_last, tile_n)
    out_ref[...] = (jnp.dot(hp, w3_ref[0], preferred_element_type=jnp.float32)
                    + jnp.dot(hc, w3_ref[1], preferred_element_type=jnp.float32)
                    + jnp.dot(hn, w3_ref[2], preferred_element_type=jnp.float32)
                    + b3_ref[...])


def _pick_tile_rows(B, T, target_rows, align=16):
    """Rows per tile: a multiple of T (no sequence straddles a tile) that divides
    N, is aligned for bf16 sublane packing, and leaves >= 2 grid tiles whenever
    possible (keeps both v7x TensorCores busy, never one giant block)."""
    N = B * T
    cands = [s * T for s in range(1, B + 1) if B % s == 0]
    aligned = [c for c in cands if c % align == 0 and c < N]
    good = [c for c in aligned if c <= target_rows]
    if good:
        return max(good)
    if aligned:
        return min(aligned)   # smallest multi-tile option (exceeds target, still bounded)
    # TODO(synk): degenerate (B, T) with no aligned divisor falls back to one
    # full block; pad N / mask a ragged last tile if such shapes get large.
    return N


def gloss2pose_forward(gloss_seq, params, *, tile_rows_target=1024):
    B, T = gloss_seq.shape
    N = B * T
    tile_n = _pick_tile_rows(B, T, tile_rows_target)
    num_tiles = N // tile_n

    idx = gloss_seq.reshape(N, 1).astype(jnp.int32)

    # Static weight packing: conv1 taps folded along input channels (one wide-K
    # matmul); conv2/conv3 kept as (3, Cin, Cout) for per-tap matmuls; matmul
    # operands cast to bf16; last layer zero-padded to a lane-dense 128 output.
    tab = params["embed"].astype(jnp.bfloat16)
    w1p = params["w1"].reshape(3 * EMBED, HID1).astype(jnp.bfloat16)
    w2p = params["w2"].astype(jnp.bfloat16)                              # (3, 256, 512)
    w3p = jnp.pad(params["w3"], ((0, 0), (0, 0), (0, OUT_PAD - POSE_DIM))
                  ).astype(jnp.bfloat16)                                 # (3, 512, 128)
    b3p = jnp.pad(params["b3"], ((0, 0), (0, OUT_PAD - POSE_DIM)))

    cparams = pltpu.CompilerParams(
        dimension_semantics=("parallel",),
        vmem_limit_bytes=32 * 1024 * 1024)

    # ---- Pass 1: embedding + conv1 + ReLU (+ per-tile BN partial sums) ----
    h1, stats = pl.pallas_call(
        functools.partial(_pass1_kernel, seq_len=T),
        out_shape=(jax.ShapeDtypeStruct((N, HID1), jnp.bfloat16),
                   jax.ShapeDtypeStruct((num_tiles, 8, HID1), jnp.float32)),
        grid=(num_tiles,),
        in_specs=[
            pl.BlockSpec((tile_n, 1), lambda i: (i, 0)),
            pl.BlockSpec((VOCAB, EMBED), lambda i: (0, 0)),
            pl.BlockSpec((3 * EMBED, HID1), lambda i: (0, 0)),
            pl.BlockSpec((1, HID1), lambda i: (0, 0)),
        ],
        out_specs=(
            pl.BlockSpec((tile_n, HID1), lambda i: (i, 0)),
            pl.BlockSpec((1, 8, HID1), lambda i: (i, 0, 0)),
        ),
        compiler_params=cparams,
    )(idx, tab, w1p, params["b1"])

    # Global (all B*T) training-mode BN statistics, folded to one scale/shift.
    tot = jnp.sum(stats[:, 0, :], axis=0)                          # (256,)
    totsq = jnp.sum(stats[:, 4, :], axis=0)                        # (256,)
    mean = tot / N
    var = jnp.maximum(totsq / N - mean * mean, 0.0)                # biased variance
    scale = params["gamma"] * jax.lax.rsqrt(var + BN_EPS)          # (1, 256)
    shift = params["beta"] - mean * scale                          # (1, 256)

    # ---- Pass 2: BN + conv2 + ReLU + conv3 (lane-dense, padded to 128) ----
    out = pl.pallas_call(
        functools.partial(_pass2_kernel, seq_len=T),
        out_shape=jax.ShapeDtypeStruct((N, OUT_PAD), jnp.float32),
        grid=(num_tiles,),
        in_specs=[
            pl.BlockSpec((tile_n, HID1), lambda i: (i, 0)),
            pl.BlockSpec((1, HID1), lambda i: (0, 0)),
            pl.BlockSpec((1, HID1), lambda i: (0, 0)),
            pl.BlockSpec((3, HID1, HID2), lambda i: (0, 0, 0)),
            pl.BlockSpec((1, HID2), lambda i: (0, 0)),
            pl.BlockSpec((3, HID2, OUT_PAD), lambda i: (0, 0, 0)),
            pl.BlockSpec((1, OUT_PAD), lambda i: (0, 0)),
        ],
        out_specs=pl.BlockSpec((tile_n, OUT_PAD), lambda i: (i, 0)),
        compiler_params=cparams,
    )(h1, scale, shift, w2p, params["b2"], w3p, b3p)

    # TODO(synk): the [:, :POSE_DIM] slice is a separate XLA copy; return the
    # padded (B, T, 128) slab instead if the consumer can slice lazily.
    return out[:, :POSE_DIM].reshape(B, T, POSE_DIM)


def init_params(key):
    ks = jax.random.split(key, 8)
    return {
        "embed": jax.random.normal(ks[0], (VOCAB, EMBED), jnp.float32) * 0.02,
        "w1": jax.random.normal(ks[1], (3, EMBED, HID1), jnp.float32) * 0.05,
        "b1": jax.random.normal(ks[2], (1, HID1), jnp.float32) * 0.01,
        "gamma": jnp.ones((1, HID1), jnp.float32),   # BatchNorm default init
        "beta": jnp.zeros((1, HID1), jnp.float32),
        "w2": jax.random.normal(ks[3], (3, HID1, HID2), jnp.float32) * 0.03,
        "b2": jax.random.normal(ks[4], (1, HID2), jnp.float32) * 0.01,
        "w3": jax.random.normal(ks[5], (3, HID2, POSE_DIM), jnp.float32) * 0.03,
        "b3": jax.random.normal(ks[6], (1, POSE_DIM), jnp.float32) * 0.01,
    }


def reference_forward(gloss_seq, params):
    """Pure-JAX f32 reference mirroring the PyTorch forward (training-mode BN)."""
    x = jnp.take(params["embed"], gloss_seq, axis=0)               # (B, T, 128)

    def conv1d(h, w, b):
        hp = jnp.pad(h, ((0, 0), (1, 1), (0, 0)))
        return (jnp.einsum("btc,cd->btd", hp[:, :-2], w[0])
                + jnp.einsum("btc,cd->btd", hp[:, 1:-1], w[1])
                + jnp.einsum("btc,cd->btd", hp[:, 2:], w[2])
                + b[None])

    h1 = jnp.maximum(conv1d(x, params["w1"], params["b1"]), 0.0)
    mean = jnp.mean(h1, axis=(0, 1), keepdims=True)
    var = jnp.mean((h1 - mean) ** 2, axis=(0, 1), keepdims=True)
    h1 = (h1 - mean) * jax.lax.rsqrt(var + BN_EPS) * params["gamma"][None] \
        + params["beta"][None]
    h2 = jnp.maximum(conv1d(h1, params["w2"], params["b2"]), 0.0)
    return conv1d(h2, params["w3"], params["b3"])


if __name__ == "__main__":
    key = jax.random.PRNGKey(0)
    k_idx, k_param, k_idx2 = jax.random.split(key, 3)
    params = init_params(k_param)

    # Small demo shape (batch=2, seq=8) — single full-block tile.
    B, T = 2, 8
    gloss_seq = jax.random.randint(k_idx, (B, T), 0, VOCAB, dtype=jnp.int32)
    out = jax.block_until_ready(gloss2pose_forward(gloss_seq, params))
    assert out.shape == (B, T, POSE_DIM), out.shape

    # bf16 MXU inputs + bf16 h1 round trip (f32 accumulation) -> loose tolerance.
    ref = reference_forward(gloss_seq, params)
    assert jnp.allclose(out, ref, rtol=5e-2, atol=5e-2), \
        float(jnp.max(jnp.abs(out - ref)))

    # Exercise the multi-tile path (grid = 2) and the cross-tile BatchNorm with
    # the default tile target (picker limits tile to 64 rows here).
    B2, T2 = 16, 8
    gloss_seq2 = jax.random.randint(k_idx2, (B2, T2), 0, VOCAB, dtype=jnp.int32)
    out2 = jax.block_until_ready(gloss2pose_forward(gloss_seq2, params))
    ref2 = reference_forward(gloss_seq2, params)
    assert jnp.allclose(out2, ref2, rtol=5e-2, atol=5e-2), \
        float(jnp.max(jnp.abs(out2 - ref2)))

    print("KERNEL_OK")
</pallas_src>

<mosaic_0001>
module attributes {stable_mosaic.version = 11 : i64} {
  func.func @_pass1_kernel(%arg0: i32, %arg1: memref<16x1xi32, #tpu.memory_space<vmem>>, %arg2: memref<128x128xbf16, #tpu.memory_space<vmem>>, %arg3: memref<384x256xbf16, #tpu.memory_space<vmem>>, %arg4: memref<1x256xf32, #tpu.memory_space<vmem>>, %arg5: memref<16x256xbf16, #tpu.memory_space<vmem>>, %arg6: memref<1x8x256xf32, #tpu.memory_space<vmem>>) attributes {dimension_semantics = [#tpu.dimension_semantics<parallel>], iteration_bounds = array<i64: 1>, scalar_prefetch = 0 : i64, scratch_operands = 0 : i64, tpu.core_type = #tpu.core_type<tc>, window_params = [{transform_indices = @transform_0, window_bounds = array<i64: 16, 1>}, {pipeline_mode = #tpu.pipeline_mode<synchronous>, transform_indices = @transform_1, window_bounds = array<i64: 128, 128>}, {pipeline_mode = #tpu.pipeline_mode<synchronous>, transform_indices = @transform_2, window_bounds = array<i64: 384, 256>}, {pipeline_mode = #tpu.pipeline_mode<synchronous>, transform_indices = @transform_3, window_bounds = array<i64: 1, 256>}, {transform_indices = @transform_4, window_bounds = array<i64: 16, 256>}, {transform_indices = @transform_5, window_bounds = array<i64: 1, 8, 256>}]} {
    %c0 = arith.constant 0 : index
    %c0_0 = arith.constant 0 : index
    %0 = vector.load %arg1[%c0, %c0_0] : memref<16x1xi32, #tpu.memory_space<vmem>>, vector<16x1xi32>
    %1 = tpu.iota {dimensions = array<i32: 1>} : vector<16x128xi32>
    %2 = vector.broadcast %0 : vector<16x1xi32> to vector<16x128xi32>
    %3 = arith.cmpi eq, %1, %2 : vector<16x128xi32>
    %4 = arith.extui %3 : vector<16x128xi1> to vector<16x128xi32>
    %5 = arith.sitofp %4 : vector<16x128xi32> to vector<16x128xf32>
    %6 = arith.truncf %5 : vector<16x128xf32> to vector<16x128xbf16>
    %c0_1 = arith.constant 0 : index
    %c0_2 = arith.constant 0 : index
    %7 = vector.load %arg2[%c0_1, %c0_2] : memref<128x128xbf16, #tpu.memory_space<vmem>>, vector<128x128xbf16>
    %cst = arith.constant dense<0.000000e+00> : vector<16x128xf32>
    %8 = tpu.matmul %6, %7, %cst {dimension_numbers = #tpu.dot_dimension_numbers<[1], [0], [0], [1], [0, 0, 1, 1], [], []>} : vector<16x128xbf16>, vector<128x128xbf16>, vector<16x128xf32> -> vector<16x128xf32>
    %9 = tpu.iota {dimensions = array<i32: 0>} : vector<16x1xi32>
    %c8_i32 = arith.constant 8 : i32
    %c0_i32 = arith.constant 0 : i32
    %10 = arith.cmpi eq, %c8_i32, %c0_i32 : i32
    %c1_i32 = arith.constant 1 : i32
    %11 = arith.select %10, %c1_i32, %c8_i32 : i32
    %12 = vector.broadcast %11 : i32 to vector<16x1xi32>
    %13 = arith.remsi %9, %12 : vector<16x1xi32>
    %c0_i32_3 = arith.constant 0 : i32
    %14 = vector.broadcast %c0_i32_3 : i32 to vector<16x1xi32>
    %15 = arith.cmpi ne, %13, %14 : vector<16x1xi32>
    %c0_i32_4 = arith.constant 0 : i32
    %16 = vector.broadcast %c0_i32_4 : i32 to vector<16x1xi32>
    %17 = arith.cmpi slt, %13, %16 : vector<16x1xi32>
    %c0_i32_5 = arith.constant 0 : i32
    %18 = arith.cmpi slt, %11, %c0_i32_5 : i32
    %19 = vector.broadcast %18 : i1 to vector<16x1xi1>
    %20 = vector.broadcast %19 : vector<16x1xi1> to vector<16x1xi1>
    %21 = arith.xori %17, %20 : vector<16x1xi1>
    %22 = arith.andi %21, %15 : vector<16x1xi1>
    %23 = vector.broadcast %11 : i32 to vector<16x1xi32>
    %24 = arith.addi %13, %23 : vector<16x1xi32>
    %25 = arith.select %22, %24, %13 : vector<16x1xi1>, vector<16x1xi32>
    %c0_i32_6 = arith.constant 0 : i32
    %26 = vector.broadcast %c0_i32_6 : i32 to vector<16x1xi32>
    %27 = arith.cmpi ne, %25, %26 : vector<16x1xi32>
    %28 = arith.extui %27 : vector<16x1xi1> to vector<16x1xi32>
    %29 = arith.sitofp %28 : vector<16x1xi32> to vector<16x1xf32>
    %c8_i32_7 = arith.constant 8 : i32
    %c0_i32_8 = arith.constant 0 : i32
    %30 = arith.cmpi eq, %c8_i32_7, %c0_i32_8 : i32
    %c1_i32_9 = arith.constant 1 : i32
    %31 = arith.select %30, %c1_i32_9, %c8_i32_7 : i32
    %32 = vector.broadcast %31 : i32 to vector<16x1xi32>
    %33 = arith.remsi %9, %32 : vector<16x1xi32>
    %c0_i32_10 = arith.constant 0 : i32
    %34 = vector.broadcast %c0_i32_10 : i32 to vector<16x1xi32>
    %35 = arith.cmpi ne, %33, %34 : vector<16x1xi32>
    %c0_i32_11 = arith.constant 0 : i32
    %36 = vector.broadcast %c0_i32_11 : i32 to vector<16x1xi32>
    %37 = arith.cmpi slt, %33, %36 : vector<16x1xi32>
    %c0_i32_12 = arith.constant 0 : i32
    %38 = arith.cmpi slt, %31, %c0_i32_12 : i32
    %39 = vector.broadcast %38 : i1 to vector<16x1xi1>
    %40 = vector.broadcast %39 : vector<16x1xi1> to vector<16x1xi1>
    %41 = arith.xori %37, %40 : vector<16x1xi1>
    %42 = arith.andi %41, %35 : vector<16x1xi1>
    %43 = vector.broadcast %31 : i32 to vector<16x1xi32>
    %44 = arith.addi %33, %43 : vector<16x1xi32>
    %45 = arith.select %42, %44, %33 : vector<16x1xi1>, vector<16x1xi32>
    %c7_i32 = arith.constant 7 : i32
    %46 = vector.broadcast %c7_i32 : i32 to vector<16x1xi32>
    %47 = arith.cmpi ne, %45, %46 : vector<16x1xi32>
    %48 = arith.extui %47 : vector<16x1xi1> to vector<16x1xi32>
    %49 = arith.sitofp %48 : vector<16x1xi32> to vector<16x1xf32>
    %c1_i32_13 = arith.constant 1 : i32
    %50 = tpu.dynamic_rotate %8 by %c1_i32_13 dim 0 : vector<16x128xf32>, i32 -> vector<16x128xf32>
    %51 = vector.broadcast %29 : vector<16x1xf32> to vector<16x128xf32>
    %52 = arith.mulf %50, %51 : vector<16x128xf32>
    %53 = arith.truncf %52 : vector<16x128xf32> to vector<16x128xbf16>
    %c15_i32 = arith.constant 15 : i32
    %54 = tpu.dynamic_rotate %8 by %c15_i32 dim 0 : vector<16x128xf32>, i32 -> vector<16x128xf32>
    %55 = vector.broadcast %49 : vector<16x1xf32> to vector<16x128xf32>
    %56 = arith.mulf %54, %55 : vector<16x128xf32>
    %57 = arith.truncf %56 : vector<16x128xf32> to vector<16x128xbf16>
    %58 = arith.truncf %8 : vector<16x128xf32> to vector<16x128xbf16>
    %59 = tpu.concatenate %53, %58, %57 in 1 : vector<16x128xbf16>, vector<16x128xbf16>, vector<16x128xbf16> -> vector<16x384xbf16>
    %c0_14 = arith.constant 0 : index
    %c0_15 = arith.constant 0 : index
    %60 = vector.load %arg3[%c0_14, %c0_15] : memref<384x256xbf16, #tpu.memory_space<vmem>>, vector<384x256xbf16>
    %cst_16 = arith.constant dense<0.000000e+00> : vector<16x256xf32>
    %61 = tpu.matmul %59, %60, %cst_16 {dimension_numbers = #tpu.dot_dimension_numbers<[1], [0], [0], [1], [0, 0, 1, 1], [], []>} : vector<16x384xbf16>, vector<384x256xbf16>, vector<16x256xf32> -> vector<16x256xf32>
    %c0_17 = arith.constant 0 : index
    %c0_18 = arith.constant 0 : index
    %62 = vector.load %arg4[%c0_17, %c0_18] : memref<1x256xf32, #tpu.memory_space<vmem>>, vector<1x256xf32>
    %63 = vector.broadcast %62 : vector<1x256xf32> to vector<16x256xf32>
    %64 = arith.addf %61, %63 : vector<16x256xf32>
    %cst_19 = arith.constant 0.000000e+00 : f32
    %65 = vector.broadcast %cst_19 : f32 to vector<16x256xf32>
    %66 = arith.maximumf %64, %65 : vector<16x256xf32>
    %67 = arith.truncf %66 : vector<16x256xf32> to vector<16x256xbf16>
    %c0_20 = arith.constant 0 : index
    %c0_21 = arith.constant 0 : index
    %68 = vector.load %arg5[%c0_20, %c0_21] : memref<16x256xbf16, #tpu.memory_space<vmem>>, vector<16x256xbf16>
    tpu.vector_store %arg5[%c0_20, %c0_21], %67 {strides = array<i32>} : memref<16x256xbf16, #tpu.memory_space<vmem>>, vector<16x256xbf16>,
    %cst_22 = arith.constant dense<0.000000e+00> : vector<256xf32>
    %69 = vector.multi_reduction <add>, %66, %cst_22 [0] : vector<16x256xf32> to vector<256xf32>
    %70 = vector.shape_cast %69 : vector<256xf32> to vector<1x256xf32>
    %71 = arith.mulf %66, %66 : vector<16x256xf32>
    %cst_23 = arith.constant dense<0.000000e+00> : vector<256xf32>
    %72 = vector.multi_reduction <add>, %71, %cst_23 [0] : vector<16x256xf32> to vector<256xf32>
    %73 = vector.shape_cast %72 : vector<256xf32> to vector<1x256xf32>
    %74 = vector.shape_cast %70 : vector<1x256xf32> to vector<1x256xf32>
    %75 = vector.broadcast %74 : vector<1x256xf32> to vector<4x256xf32>
    %76 = vector.shape_cast %73 : vector<1x256xf32> to vector<1x256xf32>
    %77 = vector.broadcast %76 : vector<1x256xf32> to vector<4x256xf32>
    %78 = tpu.concatenate %75, %77 in 0 : vector<4x256xf32>, vector<4x256xf32> -> vector<8x256xf32>
    %c0_24 = arith.constant 0 : index
    %c0_25 = arith.constant 0 : index
    %c0_26 = arith.constant 0 : index
    %79 = vector.load %arg6[%c0_24, %c0_25, %c0_26] : memref<1x8x256xf32, #tpu.memory_space<vmem>>, vector<1x8x256xf32>
    %80 = vector.shape_cast %79 : vector<1x8x256xf32> to vector<8x256xf32>
    %81 = vector.shape_cast %78 : vector<8x256xf32> to vector<1x8x256xf32>
    tpu.vector_store %arg6[%c0_24, %c0_25, %c0_26], %81 {strides = array<i32>} : memref<1x8x256xf32, #tpu.memory_space<vmem>>, vector<1x8x256xf32>,
    return
  }
  func.func @transform_0(%arg0: i32) -> (i32, i32) {
    %c0_i32 = arith.constant 0 : i32
    %c0_i32_0 = arith.constant 0 : i32
    return %arg0, %c0_i32 : i32, i32
  }
  func.func @transform_1(%arg0: i32) -> (i32, i32) {
    %c0_i32 = arith.constant 0 : i32
    %c0_i32_0 = arith.constant 0 : i32
    %c0_i32_1 = arith.constant 0 : i32
    return %c0_i32, %c0_i32_0 : i32, i32
  }
  func.func @transform_2(%arg0: i32) -> (i32, i32) {
    %c0_i32 = arith.constant 0 : i32
    %c0_i32_0 = arith.constant 0 : i32
    %c0_i32_1 = arith.constant 0 : i32
    return %c0_i32, %c0_i32_0 : i32, i32
  }
  func.func @transform_3(%arg0: i32) -> (i32, i32) {
    %c0_i32 = arith.constant 0 : i32
    %c0_i32_0 = arith.constant 0 : i32
    %c0_i32_1 = arith.constant 0 : i32
    return %c0_i32, %c0_i32_0 : i32, i32
  }
  func.func @transform_4(%arg0: i32) -> (i32, i32) {
    %c0_i32 = arith.constant 0 : i32
    %c0_i32_0 = arith.constant 0 : i32
    return %arg0, %c0_i32 : i32, i32
  }
  func.func @transform_5(%arg0: i32) -> (i32, i32, i32) {
    %c0_i32 = arith.constant 0 : i32
    %c0_i32_0 = arith.constant 0 : i32
    %c0_i32_1 = arith.constant 0 : i32
    return %arg0, %c0_i32, %c0_i32_0 : i32, i32, i32
  }
}

</mosaic_0001>

<llo_original>
// kernel: tpu_custom_call.1
$region0: #{tpu_custom_call.1}
  #allocation0 [shape = 'u32[]', space=smem, size = 0x4, offset = 0x4, fixed_abs, tag = 'smem constant byte address 0x4 - core index']
  #allocation1 [shape = 'u32[144,128]{1,0:T(1,128)}', space=vmem, size = 0x12000, scoped, tag = 'internal scratch']
  %s0 = inlined_call_operand.vmem [shape: s32[16,1], index: 0, kind: input, shape index: {}]
  %s1 = inlined_call_operand.hbm [shape: bf16[128,128], index: 1, kind: input, shape index: {}]
  %s2 = inlined_call_operand.hbm [shape: bf16[384,256], index: 2, kind: input, shape index: {}]
  %s3 = inlined_call_operand.vmem [shape: f32[1,256], index: 3, kind: input, shape index: {}]
  %s4 = inlined_call_operand.hbm [shape: bf16[16,256], index: 4, kind: output, shape index: {0}]
  %s5 = inlined_call_operand.hbm [shape: f32[1,8,256], index: 5, kind: output, shape index: {1}]
  %6 = xla_tuple %s4, %s5
  %s7 = sld [smem:[#allocation0]]
  $region42: #{tpu_custom_call.1} parent=0
    _
  %s9 = ssub.s32 1, %s7
  %s10 = scalar_select 0, %s9, %s7
  $region1: #{tpu_custom_call.1} parent=0
    #allocation2 [shape = 'u8[32768]{0}', space=vmem, size = 0x8000, scoped, tag = 'input window, operand 1, single buffered']
    #allocation3 [shape = 's32[1]{0}', space=sflag, size = 0x4, scoped, tag = 'scoped memory for tpu_custom_call.1']
    #allocation4 [shape = 's32[1]{0}', space=sflag, size = 0x4, scoped, tag = 'scoped memory for tpu_custom_call.1']
    #allocation5 [shape = 'u8[196608]{0}', space=vmem, size = 0x30000, scoped, tag = 'input window, operand 2, single buffered']
    #allocation6 [shape = 's32[1]{0}', space=sflag, size = 0x4, scoped, tag = 'scoped memory for tpu_custom_call.1']
    #allocation7 [shape = 'u8[8192]{0}', space=vmem, size = 0x2000, scoped, tag = 'output window, operand 0, single buffered']
    #allocation8 [shape = 'u8[8192]{0}', space=vmem, size = 0x2000, scoped, tag = 'output window, operand 1, single buffered']
    #allocation9 [shape = 's32[1]{0}', space=sflag, size = 0x4, scoped, tag = 'scoped memory for tpu_custom_call.1']
    %11 = vsyncpa [#allocation3], 0
    %12 = vsyncpa [#allocation6], 0
    %13 = vsyncpa [#allocation4], 0
    %14 = vsyncpa [#allocation9], 0
    // Predicated region
    $region2: #{tpu_custom_call.1} parent=1 // pred_check
      _
    $region3: #{tpu_custom_call.1} parent=1 // pred_check_branch
      %16 = sbr.rel (0) target = $region5
    $region4: #{tpu_custom_call.1} parent=1 // pred_region
      _
    $region5: #{tpu_custom_call.1} parent=1 // pred_fallthru
      _
    // Predicated region
    $region6: #{tpu_custom_call.1} parent=1 // pred_check
      _
    $region7: #{tpu_custom_call.1} parent=1 // pred_check_branch
      %18 = sbr.rel (0) target = $region9
    $region8: #{tpu_custom_call.1} parent=1 // pred_region
      %s20 = ssub.s32 1024, 1024
      %21 = vsyncadd [#allocation3], %s20
      %s22 = sshll.u32 [#allocation2], 4
      %s23 = int_to_ptr.vmem [resolvable:$true] %s22
      %28 = dma.hbm_to_vmem [thread:$0]  %s1, 1024, %s23, [#allocation3], 64, 64, 4
    $region9: #{tpu_custom_call.1} parent=1 // pred_fallthru
      _
    // Predicated region
    $region10: #{tpu_custom_call.1} parent=1 // pred_check
      _
    $region11: #{tpu_custom_call.1} parent=1 // pred_check_branch
      %30 = sbr.rel (0) target = $region13
    $region12: #{tpu_custom_call.1} parent=1 // pred_region
      %s32 = ssub.s32 6144, 6144
      %33 = vsyncadd [#allocation6], %s32
      %s34 = sshll.u32 [#allocation5], 4
      %s35 = int_to_ptr.vmem [resolvable:$true] %s34
      %40 = dma.hbm_to_vmem [thread:$0]  %s2, 6144, %s35, [#allocation6], 128, 128, 8
    $region13: #{tpu_custom_call.1} parent=1 // pred_fallthru
      _
    // Predicated region
    $region14: #{tpu_custom_call.1} parent=1 // pred_check
      _
    $region15: #{tpu_custom_call.1} parent=1 // pred_check_branch
      %42 = sbr.rel (0) target = $region17
    $region16: #{tpu_custom_call.1} parent=1 // pred_region
      _
    $region17: #{tpu_custom_call.1} parent=1 // pred_fallthru
      _
    // Predicated region
    $region18: #{tpu_custom_call.1} parent=1 // pred_check
      _
    $region19: #{tpu_custom_call.1} parent=1 // pred_check_branch
      %44 = sbr.rel (0) target = $region21
    $region20: #{tpu_custom_call.1} parent=1 // pred_region
      %45 = dma.done [#allocation3], 1024
    $region21: #{tpu_custom_call.1} parent=1 // pred_fallthru
      _
    // Predicated region
    $region22: #{tpu_custom_call.1} parent=1 // pred_check
      _
    $region23: #{tpu_custom_call.1} parent=1 // pred_check_branch
      %47 = sbr.rel (0) target = $region25
    $region24: #{tpu_custom_call.1} parent=1 // pred_region
      %48 = dma.done [#allocation6], 6144
    $region25: #{tpu_custom_call.1} parent=1 // pred_fallthru
      _
    %v50 = vld [vmem:[%s0] sm:$0xff]
    %v51 = vld [vmem:[%s0 + $0x8] sm:$0xff]
    %v52 = vlaneseq
    %v53 = vand.u32 %v52, 127
    %54 = vset.pattern.permute.xlu0 0
    %55 = vperm.xlu0 %54, %v50
    %v56 = vpop.permute.xlu0 %55
    %57 = vset.pattern.permute.xlu0 0
    %58 = vperm.xlu0 %57, %v51
    %v59 = vpop.permute.xlu0 %58
    %vm60 = vcmp.eq.s32.totalorder %v53, %v56
    %vm61 = vcmp.eq.s32.totalorder %v53, %v59
    %v62 = vsel %vm60, 1, 0
    %v63 = vsel %vm61, 1, 0
    %v64 = vcvt.s32.f32 %v62
    %v65 = vcvt.s32.f32 %v63
    %v66 = vpack.c.bf16 %v65, %v64
    %v67 = vld [vmem:[#allocation2] sm:$0xf]
    %v68 = vld [vmem:[#allocation2 + $0x4] sm:$0xf]
    %v69 = vld [vmem:[#allocation2 + $0x8] sm:$0xf]
    %v70 = vld [vmem:[#allocation2 + $0xc] sm:$0xf]
    %v71 = vld [vmem:[#allocation2 + $0x10] sm:$0xf]
    %v72 = vld [vmem:[#allocation2 + $0x14] sm:$0xf]
    %v73 = vld [vmem:[#allocation2 + $0x18] sm:$0xf]
    %v74 = vld [vmem:[#allocation2 + $0x1c] sm:$0xf]
    %v75 = vld [vmem:[#allocation2 + $0x20] sm:$0xf]
    %v76 = vld [vmem:[#allocation2 + $0x24] sm:$0xf]
    %v77 = vld [vmem:[#allocation2 + $0x28] sm:$0xf]
    %v78 = vld [vmem:[#allocation2 + $0x2c] sm:$0xf]
    %v79 = vld [vmem:[#allocation2 + $0x30] sm:$0xf]
    %v80 = vld [vmem:[#allocation2 + $0x34] sm:$0xf]
    %v81 = vld [vmem:[#allocation2 + $0x38] sm:$0xf]
    %v82 = vld [vmem:[#allocation2 + $0x3c] sm:$0xf]
    %v99 = vunpack.c.l.b16 %v67
    %v100 = vunpack.c.l.b16 %v68
    %v101 = vunpack.c.l.b16 %v69
    %v102 = vunpack.c.l.b16 %v70
    %v103 = vunpack.c.l.b16 %v71
    %v104 = vunpack.c.l.b16 %v72
    %v105 = vunpack.c.l.b16 %v73
    %v106 = vunpack.c.l.b16 %v74
    %v107 = vunpack.c.l.b16 %v75
    %v108 = vunpack.c.l.b16 %v76
    %v109 = vunpack.c.l.b16 %v77
    %v110 = vunpack.c.l.b16 %v78
    %v111 = vunpack.c.l.b16 %v79
    %v112 = vunpack.c.l.b16 %v80
    %v113 = vunpack.c.l.b16 %v81
    %v114 = vunpack.c.l.b16 %v82
    %v115 = vpack.c.b16 %v100, %v99
    %v116 = vpack.c.b16 %v102, %v101
    %v117 = vpack.c.b16 %v104, %v103
    %v118 = vpack.c.b16 %v106, %v105
    %v119 = vpack.c.b16 %v108, %v107
    %v120 = vpack.c.b16 %v110, %v109
    %v121 = vpack.c.b16 %v112, %v111
    %v122 = vpack.c.b16 %v114, %v113
    %131 = vmatprep.subr.bf16.mxu0 0
    %132 = vmatpush1.bf16.msra.mxu0 %v115
    %133 = vmatprep.subr.bf16.mxu0 0
    %134 = vmatpush1.bf16.msra.mxu0 %v116
    %135 = vmatprep.subr.bf16.mxu0 0
    %136 = vmatpush1.bf16.msra.mxu0 %v117
    %137 = vmatprep.subr.bf16.mxu0 0
    %138 = vmatpush1.bf16.msra.mxu0 %v118
    %139 = vmatprep.subr.bf16.mxu0 0
    %140 = vmatpush1.bf16.msra.mxu0 %v119
    %141 = vmatprep.subr.bf16.mxu0 0
    %142 = vmatpush1.bf16.msra.mxu0 %v120
    %143 = vmatprep.subr.bf16.mxu0 0
    %144 = vmatpush1.bf16.msra.mxu0 %v121
    %145 = vmatprep.subr.bf16.mxu0 0
    %146 = vmatpush1.bf16.msra.mxu0 %v122
    %147 = vmatprep.subr.bf16.mxu0 0
    %148 = vmatpush1.bf16.msra.mxu0 0
    %149 = vmatprep.subr.bf16.mxu0 0
    %150 = vmatpush1.bf16.msra.mxu0 0
    %151 = vmatprep.subr.bf16.mxu0 0
    %152 = vmatpush1.bf16.msra.mxu0 0
    %153 = vmatprep.subr.bf16.mxu0 0
    %154 = vmatpush1.bf16.msra.mxu0 0
    %155 = vmatprep.subr.bf16.mxu0 0
    %156 = vmatpush1.bf16.msra.mxu0 0
    %157 = vmatprep.subr.bf16.mxu0 0
    %158 = vmatpush1.bf16.msra.mxu0 0
    %159 = vmatprep.subr.bf16.mxu0 0
    %160 = vmatpush1.bf16.msra.mxu0 0
    %161 = vmatprep.subr.bf16.mxu0 0
    %162 = vmatpush1.bf16.msra.mxu0 0
    %163 = vmatprep.mubr.bf16.mxu0 0
    %164 = vmatmul.mubr.bf16.gmra.mrb[0].mxu0 %v66
    %v165 = vpop.f32.mrb[0].mxu0
    %v166 = vadd.f32 0.0, %v165
    %v167 = vpop.f32.mrb[0].mxu0
    %v168 = vpop.f32.mrb[0].mxu0
    %v169 = vadd.f32 0.0, %v168
    %v170 = vpop.f32.mrb[0].mxu0
    %171 = vdwg.mxu0
    %v172 = vlaneseq
    %v173 = vshrl.u32 %v172, 7
    %v174 = vadd.s32 %v173, 8
    %vm175 = vcmp.lt.s32.totalorder %v173, 0
    %v176 = vsub.s32 0, %v173
    %v177 = vsel %vm175, %v176, %v173
    %v178 = vshrl.u32 %v177, 3
    %v179 = vand.u32 %v177, 7
    %v180 = vsub.s32 0, %v179
    %v181 = vsel %vm175, %v180, %v179
    %vm182 = vcmp.lt.s32.totalorder %v174, 0
    %v183 = vsub.s32 0, %v174
    %v184 = vsel %vm182, %v183, %v174
    %v185 = vshrl.u32 %v184, 3
    %v186 = vand.u32 %v184, 7
    %v187 = vsub.s32 0, %v186
    %v188 = vsel %vm182, %v187, %v186
    %vm189 = vcmp.ne.s32.totalorder %v181, 0
    %vm190 = vcmp.ne.s32.totalorder %v188, 0
    %vm191 = vcmp.lt.s32.totalorder %v181, 0
    %vm192 = vcmp.lt.s32.totalorder %v188, 0
    %vm193 = vmand %vm191, %vm189
    %vm194 = vmand %vm192, %vm190
    %v195 = vadd.s32 %v181, 8
    %v196 = vadd.s32 %v188, 8
    %v197 = vsel %vm193, %v195, %v181
    %v198 = vsel %vm194, %v196, %v188
    %vm199 = vcmp.ne.s32.totalorder %v197, 0
    %vm200 = vcmp.ne.s32.totalorder %v198, 0
    %v201 = vsel %vm199, 1, 0
    %v202 = vsel %vm200, 1, 0
    %v203 = vcvt.s32.f32 %v201
    %v204 = vcvt.s32.f32 %v202
    %vm205 = vcmp.ne.s32.totalorder %v197, 7
    %vm206 = vcmp.ne.s32.totalorder %v198, 7
    %v207 = vsel %vm205, 1, 0
    %v208 = vsel %vm206, 1, 0
    %v209 = vcvt.s32.f32 %v207
    %v210 = vcvt.s32.f32 %v208
    %v211 = vrot.slane %v166, 7
    %v212 = vrot.slane %v169, 7
    %vm213 = vcmp.lt.s32.totalorder %v173, 1
    %v214 = vsel %vm213, %v211, %v212
    %v215 = vsel %vm213, %v212, %v211
    %v216 = vmul.f32 %v215, %v203
    %v217 = vmul.f32 %v214, %v204
    %v218 = vpack.c.bf16 %v217, %v216
    %v219 = vrot.slane %v166, 1
    %v220 = vrot.slane %v169, 1
    %vm221 = vcmp.lt.s32.totalorder %v173, 7
    %v222 = vsel %vm221, %v219, %v220
    %v223 = vsel %vm221, %v220, %v219
    %v224 = vmul.f32 %v222, %v209
    %v225 = vmul.f32 %v223, %v210
    %v226 = vpack.c.bf16 %v225, %v224
    %v227 = vpack.c.bf16 %v169, %v166
    %v228 = vld [vmem:[#allocation5] sm:$0xff]
    %v229 = vld [vmem:[#allocation5 + $0x8] sm:$0xff]
    %v230 = vld [vmem:[#allocation5 + $0x10] sm:$0xff]
    %v231 = vld [vmem:[#allocation5 + $0x18] sm:$0xff]
    %v232 = vld [vmem:[#allocation5 + $0x20] sm:$0xff]
    %v233 = vld [vmem:[#allocation5 + $0x28] sm:$0xff]
    %v234 = vld [vmem:[#allocation5 + $0x30] sm:$0xff]
    %v235 = vld [vmem:[#allocation5 + $0x38] sm:$0xff]
    %v236 = vld [vmem:[#allocation5 + $0x40] sm:$0xff]
    %v237 = vld [vmem:[#allocation5 + $0x48] sm:$0xff]
    %v238 = vld [vmem:[#allocation5 + $0x50] sm:$0xff]
    %v239 = vld [vmem:[#allocation5 + $0x58] sm:$0xff]
    %v240 = vld [vmem:[#allocation5 + $0x60] sm:$0xff]
    %v241 = vld [vmem:[#allocation5 + $0x68] sm:$0xff]
    %v242 = vld [vmem:[#allocation5 + $0x70] sm:$0xff]
    %v243 = vld [vmem:[#allocation5 + $0x78] sm:$0xff]
    %v244 = vld [vmem:[#allocation5 + $0x80] sm:$0xff]
    %v245 = vld [vmem:[#allocation5 + $0x88] sm:$0xff]
    %v246 = vld [vmem:[#allocation5 + $0x90] sm:$0xff]
    %v247 = vld [vmem:[#allocation5 + $0x98] sm:$0xff]
    %v248 = vld [vmem:[#allocation5 + $0xa0] sm:$0xff]
    %v249 = vld [vmem:[#allocation5 + $0xa8] sm:$0xff]
    %v250 = vld [vmem:[#allocation5 + $0xb0] sm:$0xff]
    %v251 = vld [vmem:[#allocation5 + $0xb8] sm:$0xff]
    %v252 = vld [vmem:[#allocation5 + $0xc0] sm:$0xff]
    %v253 = vld [vmem:[#allocation5 + $0xc8] sm:$0xff]
    %v254 = vld [vmem:[#allocation5 + $0xd0] sm:$0xff]
    %v255 = vld [vmem:[#allocation5 + $0xd8] sm:$0xff]
    %v256 = vld [vmem:[#allocation5 + $0xe0] sm:$0xff]
    %v257 = vld [vmem:[#allocation5 + $0xe8] sm:$0xff]
    %v258 = vld [vmem:[#allocation5 + $0xf0] sm:$0xff]
    %v259 = vld [vmem:[#allocation5 + $0xf8] sm:$0xff]
    %v260 = vld [vmem:[#allocation5 + $0x100] sm:$0xff]
    %v261 = vld [vmem:[#allocation5 + $0x108] sm:$0xff]
    %v262 = vld [vmem:[#allocation5 + $0x110] sm:$0xff]
    %v263 = vld [vmem:[#allocation5 + $0x118] sm:$0xff]
    %v264 = vld [vmem:[#allocation5 + $0x120] sm:$0xff]
    %v265 = vld [vmem:[#allocation5 + $0x128] sm:$0xff]
    %v266 = vld [vmem:[#allocation5 + $0x130] sm:$0xff]
    %v267 = vld [vmem:[#allocation5 + $0x138] sm:$0xff]
    %v268 = vld [vmem:[#allocation5 + $0x140] sm:$0xff]
    %v269 = vld [vmem:[#allocation5 + $0x148] sm:$0xff]
    %v270 = vld [vmem:[#allocation5 + $0x150] sm:$0xff]
    %v271 = vld [vmem:[#allocation5 + $0x158] sm:$0xff]
    %v272 = vld [vmem:[#allocation5 + $0x160] sm:$0xff]
    %v273 = vld [vmem:[#allocation5 + $0x168] sm:$0xff]
    %v274 = vld [vmem:[#allocation5 + $0x170] sm:$0xff]
    %v275 = vld [vmem:[#allocation5 + $0x178] sm:$0xff]
    %v276 = vld [vmem:[%s3] sm:$0x3]
    %v278 = vlaneseq
    %v279 = vshrl.u32 %v278, 7
    %v280 = vsub.s32 0, %v279
    %v281 = vrot.slane %v276, %v280
    %v282 = vlaneseq
    %v283 = vshrl.u32 %v282, 7
    %v284 = vsub.s32 1, %v283
    %v285 = vrot.slane %v276, %v284
    %v336 = vunpack.c.l.b16 %v228
    %v337 = vunpack.c.h.b16 %v228
    %v338 = vunpack.c.l.b16 %v229
    %v339 = vunpack.c.h.b16 %v229
    %v340 = vunpack.c.l.b16 %v230
    %v341 = vunpack.c.h.b16 %v230
    %v342 = vunpack.c.l.b16 %v231
    %v343 = vunpack.c.h.b16 %v231
    %v344 = vunpack.c.l.b16 %v232
    %v345 = vunpack.c.h.b16 %v232
    %v346 = vunpack.c.l.b16 %v233
    %v347 = vunpack.c.h.b16 %v233
    %v348 = vunpack.c.l.b16 %v234
    %v349 = vunpack.c.h.b16 %v234
    %v350 = vunpack.c.l.b16 %v235
    %v351 = vunpack.c.h.b16 %v235
    %v352 = vunpack.c.l.b16 %v236
    %v353 = vunpack.c.h.b16 %v236
    %v354 = vunpack.c.l.b16 %v237
    %v355 = vunpack.c.h.b16 %v237
    %v356 = vunpack.c.l.b16 %v238
    %v357 = vunpack.c.h.b16 %v238
    %v358 = vunpack.c.l.b16 %v239
    %v359 = vunpack.c.h.b16 %v239
    %v360 = vunpack.c.l.b16 %v240
    %v361 = vunpack.c.h.b16 %v240
    %v362 = vunpack.c.l.b16 %v241
    %v363 = vunpack.c.h.b16 %v241
    %v364 = vunpack.c.l.b16 %v242
    %v365 = vunpack.c.h.b16 %v242
    %v366 = vunpack.c.l.b16 %v243
    %v367 = vunpack.c.h.b16 %v243
    %v368 = vunpack.c.l.b16 %v244
    %v369 = vunpack.c.h.b16 %v244
    %v370 = vunpack.c.l.b16 %v245
    %v371 = vunpack.c.h.b16 %v245
    %v372 = vunpack.c.l.b16 %v246
    %v373 = vunpack.c.h.b16 %v246
    %v374 = vunpack.c.l.b16 %v247
    %v375 = vunpack.c.h.b16 %v247
    %v376 = vunpack.c.l.b16 %v248
    %v377 = vunpack.c.h.b16 %v248
    %v378 = vunpack.c.l.b16 %v249
    %v379 = vunpack.c.h.b16 %v249
    %v380 = vunpack.c.l.b16 %v250
    %v381 = vunpack.c.h.b16 %v250
    %v382 = vunpack.c.l.b16 %v251
    %v383 = vunpack.c.h.b16 %v251
    %v384 = vunpack.c.l.b16 %v252
    %v385 = vunpack.c.h.b16 %v252
    %v386 = vunpack.c.l.b16 %v253
    %v387 = vunpack.c.h.b16 %v253
    %v388 = vunpack.c.l.b16 %v254
    %v389 = vunpack.c.h.b16 %v254
    %v390 = vunpack.c.l.b16 %v255
    %v391 = vunpack.c.h.b16 %v255
    %v392 = vunpack.c.l.b16 %v256
    %v393 = vunpack.c.h.b16 %v256
    %v394 = vunpack.c.l.b16 %v257
    %v395 = vunpack.c.h.b16 %v257
    %v396 = vunpack.c.l.b16 %v258
    %v397 = vunpack.c.h.b16 %v258
    %v398 = vunpack.c.l.b16 %v259
    %v399 = vunpack.c.h.b16 %v259
    %v400 = vunpack.c.l.b16 %v260
    %v401 = vunpack.c.h.b16 %v260
    %v402 = vunpack.c.l.b16 %v261
    %v403 = vunpack.c.h.b16 %v261
    %v404 = vunpack.c.l.b16 %v262
    %v405 = vunpack.c.h.b16 %v262
    %v406 = vunpack.c.l.b16 %v263
    %v407 = vunpack.c.h.b16 %v263
    %v408 = vunpack.c.l.b16 %v264
    %v409 = vunpack.c.h.b16 %v264
    %v410 = vunpack.c.l.b16 %v265
    %v411 = vunpack.c.h.b16 %v265
    %v412 = vunpack.c.l.b16 %v266
    %v413 = vunpack.c.h.b16 %v266
    %v414 = vunpack.c.l.b16 %v267
    %v415 = vunpack.c.h.b16 %v267
    %v416 = vunpack.c.l.b16 %v268
    %v417 = vunpack.c.h.b16 %v268
    %v418 = vunpack.c.l.b16 %v269
    %v419 = vunpack.c.h.b16 %v269
    %v420 = vunpack.c.l.b16 %v270
    %v421 = vunpack.c.h.b16 %v270
    %v422 = vunpack.c.l.b16 %v271
    %v423 = vunpack.c.h.b16 %v271
    %v424 = vunpack.c.l.b16 %v272
    %v425 = vunpack.c.h.b16 %v272
    %v426 = vunpack.c.l.b16 %v273
    %v427 = vunpack.c.h.b16 %v273
    %v428 = vunpack.c.l.b16 %v274
    %v429 = vunpack.c.h.b16 %v274
    %v430 = vunpack.c.l.b16 %v275
    %v431 = vunpack.c.h.b16 %v275
    %v432 = vpack.c.b16 %v338, %v336
    %v433 = vpack.c.b16 %v339, %v337
    %v434 = vpack.c.b16 %v342, %v340
    %v435 = vpack.c.b16 %v343, %v341
    %v436 = vpack.c.b16 %v346, %v344
    %v437 = vpack.c.b16 %v347, %v345
    %v438 = vpack.c.b16 %v350, %v348
    %v439 = vpack.c.b16 %v351, %v349
    %v440 = vpack.c.b16 %v354, %v352
    %v441 = vpack.c.b16 %v355, %v353
    %v442 = vpack.c.b16 %v358, %v356
    %v443 = vpack.c.b16 %v359, %v357
    %v444 = vpack.c.b16 %v362, %v360
    %v445 = vpack.c.b16 %v363, %v361
    %v446 = vpack.c.b16 %v366, %v364
    %v447 = vpack.c.b16 %v367, %v365
    %v448 = vpack.c.b16 %v370, %v368
    %v449 = vpack.c.b16 %v371, %v369
    %v450 = vpack.c.b16 %v374, %v372
    %v451 = vpack.c.b16 %v375, %v373
    %v452 = vpack.c.b16 %v378, %v376
    %v453 = vpack.c.b16 %v379, %v377
    %v454 = vpack.c.b16 %v382, %v380
    %v455 = vpack.c.b16 %v383, %v381
    %v456 = vpack.c.b16 %v386, %v384
    %v457 = vpack.c.b16 %v387, %v385
    %v458 = vpack.c.b16 %v390, %v388
    %v459 = vpack.c.b16 %v391, %v389
    %v460 = vpack.c.b16 %v394, %v392
    %v461 = vpack.c.b16 %v395, %v393
    %v462 = vpack.c.b16 %v398, %v396
    %v463 = vpack.c.b16 %v399, %v397
    %v464 = vpack.c.b16 %v402, %v400
    %v465 = vpack.c.b16 %v403, %v401
    %v466 = vpack.c.b16 %v406, %v404
    %v467 = vpack.c.b16 %v407, %v405
    %v468 = vpack.c.b16 %v410, %v408
    %v469 = vpack.c.b16 %v411, %v409
    %v470 = vpack.c.b16 %v414, %v412
    %v471 = vpack.c.b16 %v415, %v413
    %v472 = vpack.c.b16 %v418, %v416
    %v473 = vpack.c.b16 %v419, %v417
    %v474 = vpack.c.b16 %v422, %v420
    %v475 = vpack.c.b16 %v423, %v421
    %v476 = vpack.c.b16 %v426, %v424
    %v477 = vpack.c.b16 %v427, %v425
    %v478 = vpack.c.b16 %v430, %v428
    %v479 = vpack.c.b16 %v431, %v429
    %528 = vmatprep.subr.bf16.mxu0 %v433
    %529 = vmatpush1.bf16.msra.mxu0 %v432
    %530 = vmatprep.subr.bf16.mxu0 %v435
    %531 = vmatpush1.bf16.msra.mxu0 %v434
    %532 = vmatprep.subr.bf16.mxu0 %v437
    %533 = vmatpush1.bf16.msra.mxu0 %v436
    %534 = vmatprep.subr.bf16.mxu0 %v439
    %535 = vmatpush1.bf16.msra.mxu0 %v438
    %536 = vmatprep.subr.bf16.mxu0 %v441
    %537 = vmatpush1.bf16.msra.mxu0 %v440
    %538 = vmatprep.subr.bf16.mxu0 %v443
    %539 = vmatpush1.bf16.msra.mxu0 %v442
    %540 = vmatprep.subr.bf16.mxu0 %v445
    %541 = vmatpush1.bf16.msra.mxu0 %v444
    %542 = vmatprep.subr.bf16.mxu0 %v447
    %543 = vmatpush1.bf16.msra.mxu0 %v446
    %544 = vmatprep.subr.bf16.mxu0 %v449
    %545 = vmatpush1.bf16.msra.mxu0 %v448
    %546 = vmatprep.subr.bf16.mxu0 %v451
    %547 = vmatpush1.bf16.msra.mxu0 %v450
    %548 = vmatprep.subr.bf16.mxu0 %v453
    %549 = vmatpush1.bf16.msra.mxu0 %v452
    %550 = vmatprep.subr.bf16.mxu0 %v455
    %551 = vmatpush1.bf16.msra.mxu0 %v454
    %552 = vmatprep.subr.bf16.mxu0 %v457
    %553 = vmatpush1.bf16.msra.mxu0 %v456
    %554 = vmatprep.subr.bf16.mxu0 %v459
    %555 = vmatpush1.bf16.msra.mxu0 %v458
    %556 = vmatprep.subr.bf16.mxu0 %v461
    %557 = vmatpush1.bf16.msra.mxu0 %v460
    %558 = vmatprep.subr.bf16.mxu0 %v463
    %559 = vmatpush1.bf16.msra.mxu0 %v462
    %560 = vmatprep.mubr.bf16.mxu0 %v227
    %561 = vmatmul.mubr.bf16.gmra.mrb[0].mxu0 %v218
    %v562 = vpop.f32.mrb[0].mxu0
    %v563 = vadd.f32 %v281, %v562
    %v564 = vpop.f32.mrb[0].mxu0
    %v565 = vadd.f32 %v285, %v564
    %v566 = vpop.f32.mrb[0].mxu0
    %v567 = vadd.f32 %v281, %v566
    %v568 = vpop.f32.mrb[0].mxu0
    %v569 = vadd.f32 %v285, %v568
    %570 = vdwg.mxu0
    %571 = vmatprep.subr.bf16.mxu0 %v465
    %572 = vmatpush1.bf16.msra.mxu0 %v464
    %573 = vmatprep.subr.bf16.mxu0 %v467
    %574 = vmatpush1.bf16.msra.mxu0 %v466
    %575 = vmatprep.subr.bf16.mxu0 %v469
    %576 = vmatpush1.bf16.msra.mxu0 %v468
    %577 = vmatprep.subr.bf16.mxu0 %v471
    %578 = vmatpush1.bf16.msra.mxu0 %v470
    %579 = vmatprep.subr.bf16.mxu0 %v473
    %580 = vmatpush1.bf16.msra.mxu0 %v472
    %581 = vmatprep.subr.bf16.mxu0 %v475
    %582 = vmatpush1.bf16.msra.mxu0 %v474
    %583 = vmatprep.subr.bf16.mxu0 %v477
    %584 = vmatpush1.bf16.msra.mxu0 %v476
    %585 = vmatprep.subr.bf16.mxu0 %v479
    %586 = vmatpush1.bf16.msra.mxu0 %v478
    %587 = vmatprep.subr.bf16.mxu0 0
    %588 = vmatpush1.bf16.msra.mxu0 0
    %589 = vmatprep.subr.bf16.mxu0 0
    %590 = vmatpush1.bf16.msra.mxu0 0
    %591 = vmatprep.subr.bf16.mxu0 0
    %592 = vmatpush1.bf16.msra.mxu0 0
    %593 = vmatprep.subr.bf16.mxu0 0
    %594 = vmatpush1.bf16.msra.mxu0 0
    %595 = vmatprep.subr.bf16.mxu0 0
    %596 = vmatpush1.bf16.msra.mxu0 0
    %597 = vmatprep.subr.bf16.mxu0 0
    %598 = vmatpush1.bf16.msra.mxu0 0
    %599 = vmatprep.subr.bf16.mxu0 0
    %600 = vmatpush1.bf16.msra.mxu0 0
    %601 = vmatprep.subr.bf16.mxu0 0
    %602 = vmatpush1.bf16.msra.mxu0 0
    %603 = vmatprep.mubr.bf16.mxu0 0
    %604 = vmatmul.mubr.bf16.gmra.mrb[0].mxu0 %v226
    %v605 = vpop.f32.mrb[0].mxu0
    %v606 = vadd.f32 %v563, %v605
    %v607 = vpop.f32.mrb[0].mxu0
    %v608 = vadd.f32 %v565, %v607
    %v609 = vpop.f32.mrb[0].mxu0
    %v610 = vadd.f32 %v567, %v609
    %v611 = vpop.f32.mrb[0].mxu0
    %v612 = vadd.f32 %v569, %v611
    %613 = vdwg.mxu0
    %v614 = vmax.f32 %v606, 0.0
    %v615 = vmax.f32 %v608, 0.0
    %v616 = vmax.f32 %v610, 0.0
    %v617 = vmax.f32 %v612, 0.0
    %v618 = vpack.c.bf16 %v616, %v614
    %v619 = vpack.c.bf16 %v617, %v615
    %v622 = vunpack.c.l.b16 %v618
    %v623 = vunpack.c.l.b16 %v619
    %v624 = vunpack.c.h.b16 %v618
    %v625 = vunpack.c.h.b16 %v619
    %v626 = vpack.c.b16 %v623, %v622
    %v627 = vpack.c.b16 %v625, %v624
    %630 = vst [vmem:[#allocation7] sm:$0xff] %v626
    %631 = vst [vmem:[#allocation7 + $0x8] sm:$0xff] %v627
    %v632 = vadd.f32 %v614, %v616
    %v633 = vrot.slane %v632, 4
    %v634 = vadd.f32 %v632, %v633
    %v635 = vrot.slane %v634, 2
    %v636 = vadd.f32 %v634, %v635
    %v637 = vrot.slane %v636, 1
    %v638 = vadd.f32 %v636, %v637
    %v639 = vadd.f32 %v615, %v617
    %v640 = vrot.slane %v639, 4
    %v641 = vadd.f32 %v639, %v640
    %v642 = vrot.slane %v641, 2
    %v643 = vadd.f32 %v641, %v642
    %v644 = vrot.slane %v643, 1
    %v645 = vadd.f32 %v643, %v644
    %v646 = vmul.f32 %v614, %v614
    %v647 = vmul.f32 %v615, %v615
    %v648 = vmul.f32 %v616, %v616
    %v649 = vmul.f32 %v617, %v617
    %v650 = vadd.f32 %v646, %v648
    %v651 = vrot.slane %v650, 4
    %v652 = vadd.f32 %v650, %v651
    %v653 = vrot.slane %v652, 2
    %v654 = vadd.f32 %v652, %v653
    %v655 = vrot.slane %v654, 1
    %v656 = vadd.f32 %v654, %v655
    %v657 = vadd.f32 %v647, %v649
    %v658 = vrot.slane %v657, 4
    %v659 = vadd.f32 %v657, %v658
    %v660 = vrot.slane %v659, 2
    %v661 = vadd.f32 %v659, %v660
    %v662 = vrot.slane %v661, 1
    %v663 = vadd.f32 %v661, %v662
    %vm664 = vcmask 1043456
    %v665 = vsel %vm664, %v638, %v656
    %v666 = vsel %vm664, %v645, %v663
    %667 = vst [vmem:[#allocation8] sm:$0xff] %v665
    %668 = vst [vmem:[#allocation8 + $0x8] sm:$0xff] %v666
    // Predicated region
    $region26: #{tpu_custom_call.1} parent=1 // pred_check
      _
    $region27: #{tpu_custom_call.1} parent=1 // pred_check_branch
      %670 = sbr.rel (0) target = $region29
    $region28: #{tpu_custom_call.1} parent=1 // pred_region
      %s672 = ssub.s32 256, 256
      %673 = vsyncadd [#allocation4], %s672
      %s674 = sshll.u32 [#allocation7], 4
      %s675 = int_to_ptr.vmem [resolvable:$true] %s674
      %680 = dma.vmem_to_hbm [thread:$0]  %s675, 256, %s4, [#allocation4], 128, 128, 8
    $region29: #{tpu_custom_call.1} parent=1 // pred_fallthru
      _
    // Predicated region
    $region30: #{tpu_custom_call.1} parent=1 // pred_check
      _
    $region31: #{tpu_custom_call.1} parent=1 // pred_check_branch
      %682 = sbr.rel (0) target = $region33
    $region32: #{tpu_custom_call.1} parent=1 // pred_region
      %s684 = ssub.s32 256, 256
      %685 = vsyncadd [#allocation9], %s684
      %s687 = sshll.u32 [#allocation8], 4
      %s688 = int_to_ptr.vmem [resolvable:$true] %s687
      %690 = dma.vmem_to_hbm [thread:$0]  %s688, 256, %s5, [#allocation9]
    $region33: #{tpu_custom_call.1} parent=1 // pred_fallthru
      _
    // Predicated region
    $region34: #{tpu_custom_call.1} parent=1 // pred_check
      _
    $region35: #{tpu_custom_call.1} parent=1 // pred_check_branch
      %692 = sbr.rel (0) target = $region37
    $region36: #{tpu_custom_call.1} parent=1 // pred_region
      %693 = dma.done [#allocation4], 256
    $region37: #{tpu_custom_call.1} parent=1 // pred_fallthru
      _
    // Predicated region
    $region38: #{tpu_custom_call.1} parent=1 // pred_check
      _
    $region39: #{tpu_custom_call.1} parent=1 // pred_check_branch
      %695 = sbr.rel (0) target = $region41
    $region40: #{tpu_custom_call.1} parent=1 // pred_region
      %696 = dma.done [#allocation9], 256
    $region41: #{tpu_custom_call.1} parent=1 // pred_fallthru
      _
    %697 = vsyncpa [#allocation3], 1
    %698 = vsyncpa [#allocation6], 1
    %699 = vsyncpa [#allocation4], 1
    %700 = vsyncpa [#allocation9], 1

</llo_original>
